<compile_context>
chip_gen: v7x
topology: tpu7x:2x2x1
jax: 0.10.0
libtpu: 0.0.40
codegen_flags: <defaults>
</compile_context>

<pallas_src>
import re

import jax
import jax.numpy as jnp
from jax.experimental import pallas as pl
from jax.experimental.pallas import tpu as pltpu


# ------------------------------------------------------------------ config ---

def _tpu_generation():
    """Best-effort TPU generation (5, 6, 7, ...); 0 if unknown."""
    try:
        kind = jax.devices()[0].device_kind  # e.g. "TPU v5 lite", "TPU v6e", "TPU7x"
        m = re.search(r"(\d+)", kind)
        return int(m.group(1)) if m else 0
    except Exception:
        return 0


def _tpu_config():
    gen = _tpu_generation()
    if gen >= 7:
        # v7x: 2 TensorCores, ~3.2 TB/s HBM, 32 MiB default scoped VMEM.
        # 4 MiB tiles -> 2 bufs x (in+out) = 16 MiB resident: fits comfortably.
        return dict(target_bytes=4 << 20, upcast_bf16=False, two_cores=True)
    if gen == 6:
        # v6e: single TC, native bf16 VPU/EUP, 32 MiB default scoped VMEM.
        return dict(target_bytes=4 << 20, upcast_bf16=False, two_cores=False)
    # v5e and older / unknown: 16 MiB default scoped VMEM -> keep 2 MiB tiles
    # (8 MiB resident), and compute sub-32-bit floats in f32 (no bf16 VPU/EUP).
    return dict(target_bytes=2 << 20, upcast_bf16=True, two_cores=False)


# ----------------------------------------------------------------- kernel ----

def _lambda_kernel_factory(func, upcast_to_f32):
    """Pallas kernel body applying `func` elementwise to one VMEM tile."""

    def kernel(x_ref, o_ref):
        x = x_ref[...]
        if (upcast_to_f32
                and jnp.issubdtype(x.dtype, jnp.floating)
                and x.dtype != jnp.float32):
            x = x.astype(jnp.float32)  # v5e: keep VPU/EUP work in native f32
        o_ref[...] = func(x).astype(o_ref.dtype)

    return kernel


# ------------------------------------------------------------- tiling math ---

def _round_up(x, m):
    return ((x + m - 1) // m) * m


def _choose_width(n):
    """Widest lane-dense (x128) last dim dividing n exactly, or None."""
    for w in (1024, 512, 256, 128):
        if n % w == 0:
            return w
    return None


def _choose_block_rows(rows, dtype_bytes, width, *, target_bytes, two_cores):
    # Sublane alignment: 8 for 32-bit, 16 for 16-bit, 32 for 8-bit dtypes.
    sub_align = max(8, 32 // max(dtype_bytes, 1))
    target_rows = max(sub_align, target_bytes // max(dtype_bytes * width, 1))
    want_split = two_cores and rows >= 2 * sub_align
    if rows <= target_rows and not want_split:
        # Single block equal to the full array extent (always a legal shape).
        return rows
    block_rows = max(sub_align, (min(target_rows, rows) // sub_align) * sub_align)
    if want_split:
        # v7x: >= 2 blocks so the "parallel" axis feeds both TensorCores, and
        # keep the step count even so the two cores stay load-balanced.
        half = _round_up(pl.cdiv(rows, 2), sub_align)
        block_rows = min(block_rows, half)
        steps = pl.cdiv(rows, block_rows)
        if steps > 2 and steps % 2 == 1:
            block_rows = max(
                sub_align, (pl.cdiv(rows, steps + 1) // sub_align) * sub_align)
    return int(block_rows)


# ---------------------------------------------------------------- wrapper ----

def make_pallas_lambda(func, *, compute_in_f32=None):
    """Return a callable equivalent to Lambda(func).forward.

    Only valid for ELEMENTWISE, shape-preserving `func`: the callable is applied
    independently per VMEM tile of a flattened view, so anything that reduces,
    reshapes, or mixes values across positions (softmax, norms, ...) would be
    silently wrong here — use plain `func(x)` for those.
    """
    cfg = _tpu_config()
    upcast = cfg["upcast_bf16"] if compute_in_f32 is None else compute_in_f32
    kernel = _lambda_kernel_factory(func, upcast)

    def _run_2d(x2d, rows, width, out_dtype):
        dtype_bytes = jnp.dtype(x2d.dtype).itemsize
        block_rows = _choose_block_rows(
            rows, dtype_bytes, width,
            target_bytes=cfg["target_bytes"], two_cores=cfg["two_cores"])
        grid = (pl.cdiv(rows, block_rows),)
        return pl.pallas_call(
            kernel,
            out_shape=jax.ShapeDtypeStruct((rows, width), out_dtype),
            grid=grid,
            in_specs=[pl.BlockSpec((block_rows, width), lambda i: (i, 0))],
            out_specs=pl.BlockSpec((block_rows, width), lambda i: (i, 0)),
            # NOTE: input_output_aliases={0: 0} would drop the extra output
            # allocation, but this wrapper cannot know whether the caller still
            # needs `x`, so it is intentionally not donated here.
            compiler_params=pltpu.CompilerParams(
                dimension_semantics=("parallel",),
            ),
        )(x2d)

    def forward(x):
        orig_shape = x.shape
        orig_dtype = x.dtype
        n = int(x.size)
        if n == 0:
            return x
        flat = jnp.ravel(x)

        width = _choose_width(n)
        if width is not None:
            # Zero-copy path (no pad, no trailing slice) — the common case.
            rows = n // width
            out2d = _run_2d(flat.reshape(rows, width), rows, width, orig_dtype)
            return out2d.reshape(orig_shape)

        # n % 128 != 0: run the kernel zero-copy on the largest 128-divisible
        # prefix; the <128-element tail goes through plain jnp.  This avoids
        # the old pad + [:n]-slice pair (two extra full HBM passes).
        width = 128
        rows = n // width
        if rows == 0:
            # Tiny input: a kernel launch is pure overhead.
            return func(flat).astype(orig_dtype).reshape(orig_shape)
        n_main = rows * width
        main = _run_2d(flat[:n_main].reshape(rows, width), rows, width, orig_dtype)
        tail = func(flat[n_main:]).astype(orig_dtype)
        return jnp.concatenate([main.reshape(-1), tail]).reshape(orig_shape)

    return forward


# ------------------------------------------------------------------- tests ---

if __name__ == "__main__":
    # Example func: SiLU (x * sigmoid(x)) — a typical Lambda usage.
    func = lambda x: x * jax.nn.sigmoid(x)
    pallas_lambda = make_pallas_lambda(func)

    key = jax.random.PRNGKey(0)
    k0, k1, k2, k3, k4 = jax.random.split(key, 5)

    # 1) Main NCHW example (zero-copy path: 2048 elems -> (2, 1024) slab).
    x = jax.random.normal(k0, (2, 4, 16, 16), dtype=jnp.float32)
    out = jax.block_until_ready(pallas_lambda(x))
    ref = func(x)
    assert out.shape == x.shape and out.dtype == x.dtype
    assert jnp.allclose(out, ref, atol=1e-6, rtol=1e-6)

    # 2) Tiny, non-128-multiple size (105 elems) -> plain-jnp small-input path.
    x_odd = jax.random.normal(k1, (3, 5, 7), dtype=jnp.float32)
    out_odd = jax.block_until_ready(pallas_lambda(x_odd))
    assert jnp.allclose(out_odd, func(x_odd), atol=1e-6, rtol=1e-6)

    # 3) Non-128-multiple size (2193 elems) -> kernel on the 128-divisible
    #    prefix + jnp tail (no pad / slice passes).
    x_rem = jax.random.normal(k2, (17, 129), dtype=jnp.float32)
    out_rem = jax.block_until_ready(pallas_lambda(x_rem))
    assert out_rem.shape == x_rem.shape
    assert jnp.allclose(out_rem, func(x_rem), atol=1e-6, rtol=1e-6)

    # 4) Larger input -> full-size tiles (and a 2-step even grid on v7x).
    x_big = jax.random.normal(k3, (4, 8, 128, 128), dtype=jnp.float32)
    out_big = jax.block_until_ready(pallas_lambda(x_big))
    assert jnp.allclose(out_big, func(x_big), atol=1e-6, rtol=1e-6)

    # 5) bf16 input: native bf16 math on v6e/v7x, f32 upcast on v5e
    #    (loose tolerance covers the 1-ulp rounding difference).
    x_bf16 = jax.random.normal(k4, (2, 4, 16, 16), dtype=jnp.bfloat16)
    out_bf16 = jax.block_until_ready(pallas_lambda(x_bf16))
    assert out_bf16.dtype == jnp.bfloat16
    assert jnp.allclose(out_bf16.astype(jnp.float32),
                        func(x_bf16).astype(jnp.float32),
                        atol=1e-2, rtol=5e-2)

    print("KERNEL_OK")
</pallas_src>

<mosaic_0001>
module attributes {stable_mosaic.version = 11 : i64} {
  func.func @kernel(%arg0: i32, %arg1: memref<2x1024xf32, #tpu.memory_space<vmem>>, %arg2: memref<2x1024xf32, #tpu.memory_space<vmem>>) attributes {dimension_semantics = [#tpu.dimension_semantics<parallel>], iteration_bounds = array<i64: 1>, scalar_prefetch = 0 : i64, scratch_operands = 0 : i64, tpu.core_type = #tpu.core_type<tc>, window_params = [{transform_indices = @transform_0, window_bounds = array<i64: 2, 1024>}, {transform_indices = @transform_1, window_bounds = array<i64: 2, 1024>}]} {
    %c0 = arith.constant 0 : index
    %c0_0 = arith.constant 0 : index
    %0 = vector.load %arg1[%c0, %c0_0] : memref<2x1024xf32, #tpu.memory_space<vmem>>, vector<2x1024xf32>
    %1 = arith.negf %0 : vector<2x1024xf32>
    %2 = math.exp %1 : vector<2x1024xf32>
    %cst = arith.constant 1.000000e+00 : f32
    %3 = vector.broadcast %cst : f32 to vector<2x1024xf32>
    %4 = arith.addf %3, %2 : vector<2x1024xf32>
    %5 = arith.divf %3, %4 : vector<2x1024xf32>
    %6 = arith.mulf %0, %5 : vector<2x1024xf32>
    %c0_1 = arith.constant 0 : index
    %c0_2 = arith.constant 0 : index
    %7 = vector.load %arg2[%c0_1, %c0_2] : memref<2x1024xf32, #tpu.memory_space<vmem>>, vector<2x1024xf32>
    tpu.vector_store %arg2[%c0_1, %c0_2], %6 {strides = array<i32>} : memref<2x1024xf32, #tpu.memory_space<vmem>>, vector<2x1024xf32>,
    return
  }
  func.func @transform_0(%arg0: i32) -> (i32, i32) {
    %c0_i32 = arith.constant 0 : i32
    %c0_i32_0 = arith.constant 0 : i32
    return %arg0, %c0_i32 : i32, i32
  }
  func.func @transform_1(%arg0: i32) -> (i32, i32) {
    %c0_i32 = arith.constant 0 : i32
    %c0_i32_0 = arith.constant 0 : i32
    return %arg0, %c0_i32 : i32, i32
  }
}

</mosaic_0001>

<llo_original>
// kernel: tpu_custom_call.1
$region0: #{tpu_custom_call.1}
  #allocation0 [shape = 'u32[]', space=smem, size = 0x4, offset = 0x4, fixed_abs, tag = 'smem constant byte address 0x4 - core index']
  #allocation1 [shape = 'u32[144,128]{1,0:T(1,128)}', space=vmem, size = 0x12000, scoped, tag = 'internal scratch']
  %s0 = inlined_call_operand.hbm [shape: f32[2,1024], index: 0, kind: input, shape index: {}]
  %s1 = inlined_call_operand.hbm [shape: f32[2,1024], index: 1, kind: output, shape index: {}]
  %s2 = sld [smem:[#allocation0]]
  $region18: #{tpu_custom_call.1} parent=0
    _
  %s4 = ssub.s32 1, %s2
  %s5 = scalar_select 0, %s4, %s2
  $region1: #{tpu_custom_call.1} parent=0
    #allocation2 [shape = 'u8[8192]{0}', space=vmem, size = 0x2000, scoped, tag = 'input window, operand 0, single buffered']
    #allocation3 [shape = 's32[1]{0}', space=sflag, size = 0x4, scoped, tag = 'scoped memory for tpu_custom_call.1']
    #allocation4 [shape = 's32[1]{0}', space=sflag, size = 0x4, scoped, tag = 'scoped memory for tpu_custom_call.1']
    #allocation5 [shape = 'u8[8192]{0}', space=vmem, size = 0x2000, scoped, tag = 'output window, operand 0, single buffered']
    %6 = vsyncpa [#allocation3], 0
    %7 = vsyncpa [#allocation4], 0
    // Predicated region
    $region2: #{tpu_custom_call.1} parent=1 // pred_check
      _
    $region3: #{tpu_custom_call.1} parent=1 // pred_check_branch
      %9 = sbr.rel (0) target = $region5
    $region4: #{tpu_custom_call.1} parent=1 // pred_region
      %s11 = ssub.s32 256, 256
      %12 = vsyncadd [#allocation3], %s11
      %s14 = sshll.u32 [#allocation2], 4
      %s15 = int_to_ptr.vmem [resolvable:$true] %s14
      %17 = dma.hbm_to_vmem [thread:$0]  %s0, 256, %s15, [#allocation3]
    $region5: #{tpu_custom_call.1} parent=1 // pred_fallthru
      _
    // Predicated region
    $region6: #{tpu_custom_call.1} parent=1 // pred_check
      _
    $region7: #{tpu_custom_call.1} parent=1 // pred_check_branch
      %19 = sbr.rel (0) target = $region9
    $region8: #{tpu_custom_call.1} parent=1 // pred_region
      %20 = dma.done [#allocation3], 256
    $region9: #{tpu_custom_call.1} parent=1 // pred_fallthru
      _
    %v21 = vld [vmem:[#allocation2] sm:$0xff]
    %v22 = vld [vmem:[#allocation2 + $0x8] sm:$0xff]
    %v23 = vxor.u32 %v21, 2147483648
    %v24 = vxor.u32 %v22, 2147483648
    %v25 = vmul.f32 %v23, 1.442695
    %v26 = vpow.pop %v25
    %v27 = vmul.f32 %v24, 1.442695
    %v28 = vpow.pop %v27
    %v29 = vadd.f32 %v26, 1.0
    %v30 = vadd.f32 %v28, 1.0
    %v31 = vrcp.pop %v29
    %v32 = vmul.f32 1.0, %v31
    %v33 = vrcp.pop %v30
    %v34 = vmul.f32 1.0, %v33
    %v35 = vmul.f32 %v21, %v32
    %v36 = vmul.f32 %v22, %v34
    %37 = vst [vmem:[#allocation5] sm:$0xff] %v35
    %38 = vst [vmem:[#allocation5 + $0x8] sm:$0xff] %v36
    // Predicated region
    $region10: #{tpu_custom_call.1} parent=1 // pred_check
      _
    $region11: #{tpu_custom_call.1} parent=1 // pred_check_branch
      %40 = sbr.rel (0) target = $region13
    $region12: #{tpu_custom_call.1} parent=1 // pred_region
      %s42 = ssub.s32 256, 256
      %43 = vsyncadd [#allocation4], %s42
      %s45 = sshll.u32 [#allocation5], 4
      %s46 = int_to_ptr.vmem [resolvable:$true] %s45
      %48 = dma.vmem_to_hbm [thread:$0]  %s46, 256, %s1, [#allocation4]
    $region13: #{tpu_custom_call.1} parent=1 // pred_fallthru
      _
    // Predicated region
    $region14: #{tpu_custom_call.1} parent=1 // pred_check
      _
    $region15: #{tpu_custom_call.1} parent=1 // pred_check_branch
      %50 = sbr.rel (0) target = $region17
    $region16: #{tpu_custom_call.1} parent=1 // pred_region
      %51 = dma.done [#allocation4], 256
    $region17: #{tpu_custom_call.1} parent=1 // pred_fallthru
      _
    %52 = vsyncpa [#allocation3], 1
    %53 = vsyncpa [#allocation4], 1

</llo_original>
